<compile_context>
chip_gen: v7x
topology: tpu7x:2x2x1
jax: 0.10.0
libtpu: 0.0.40
codegen_flags: <defaults>
</compile_context>

<pallas_src>
import jax
import jax.numpy as jnp
from jax.experimental import pallas as pl
from jax.experimental.pallas import tpu as pltpu

# ---- module hyperparameters (consistent with GraphEncoder) ----
NUM_NODE_FEATURES = 16   # num_node_features
GRAPH_HIDDEN = 32        # graph_hidden_channels
NHID = 32
NOUT = 16

# ---- problem geometry ----
N_NODES = 16             # nodes per graph-batch
N_GRAPHS = 2             # graphs per graph-batch (rows of global_mean_pool)
N_EDGES = 24             # directed edges per graph-batch
NUM_BATCHES = 8          # graph-batches processed per pallas_call

# One fat kernel step by default; set to 2 on v7x to feed both TensorCores.
NUM_SHARDS = 1
BATCHES_PER_SHARD = NUM_BATCHES // NUM_SHARDS
BN = BATCHES_PER_SHARD * N_NODES     # block-diagonal node rows per shard (128)
BG = BATCHES_PER_SHARD * N_GRAPHS    # block-diagonal graph rows per shard (16)

F_PAD = GRAPH_HIDDEN     # node features zero-padded 16 -> 32
OUT_PAD = GRAPH_HIDDEN   # nout zero-padded 16 -> 32 inside packed wm2 / bm2
N_W = 4                  # W1(pad), W2, W3@Wm1 (fused), Wm2(pad)

# bf16 MXU inputs + f32 accumulation (per review).  Use jnp.float32 here for a
# strict 1e-4 comparison against the f32 reference instead.
COMPUTE_DTYPE = jnp.bfloat16


def graph_encoder_kernel(adj_ref, padj_ref, x_ref, w_ref, b_ref, out_ref):
    """One grid step == one block-diagonal shard covering many graph-batches."""
    adj = adj_ref[0]        # (BN, BN)   block-diag  D^-1/2 (A+I) D^-1/2
    padj = padj_ref[0]      # (BG, BN)   block-diag  pool @ adj
    x = x_ref[0]            # (BN, F_PAD)
    cdt = adj.dtype         # compute dtype for MXU operands

    # conv1: (adj @ x) @ W1 + b1, ReLU   (dropout == identity at inference)
    h = jnp.dot(adj, x, preferred_element_type=jnp.float32)
    h = jnp.dot(h.astype(cdt), w_ref[0], preferred_element_type=jnp.float32)
    h = jnp.maximum(h + b_ref[0], 0.0)

    # conv2: adj @ (h @ W2) + b2, ReLU
    h = jnp.dot(h.astype(cdt), w_ref[1], preferred_element_type=jnp.float32)
    h = jnp.dot(adj, h.astype(cdt), preferred_element_type=jnp.float32)
    h = jnp.maximum(h + b_ref[1], 0.0)

    # conv3 + global_mean_pool + mol_hidden1, fused & pool-before-project:
    #   pool @ (adj @ (h W3) + b3) @ Wm1 + bm1
    #     == ((pool @ adj) @ h) @ (W3 @ Wm1) + (b3 @ Wm1 + bm1)
    g = jnp.dot(padj, h.astype(cdt), preferred_element_type=jnp.float32)
    g = jnp.dot(g.astype(cdt), w_ref[2], preferred_element_type=jnp.float32)
    g = jnp.maximum(g + b_ref[2], 0.0)

    # mol_hidden2 (output lanes padded 16 -> 32; sliced in the wrapper)
    g = jnp.dot(g.astype(cdt), w_ref[3], preferred_element_type=jnp.float32)
    out_ref[0] = (g + b_ref[3]).astype(out_ref.dtype)


# ----------------------------- graph glue (JAX) -----------------------------

def build_normalized_adjacency(edge_index, num_nodes):
    """Dense GCN adjacency: add self loops, symmetric D^-1/2 (A+I) D^-1/2."""
    src, dst = edge_index[0], edge_index[1]
    loop = jnp.arange(num_nodes, dtype=src.dtype)
    src = jnp.concatenate([src, loop])
    dst = jnp.concatenate([dst, loop])
    ones = jnp.ones(src.shape[0], dtype=jnp.float32)
    deg = jnp.zeros((num_nodes,), jnp.float32).at[dst].add(ones)
    deg_inv_sqrt = jnp.where(deg > 0, 1.0 / jnp.sqrt(deg), 0.0)
    norm = deg_inv_sqrt[src] * deg_inv_sqrt[dst]
    adj = jnp.zeros((num_nodes, num_nodes), jnp.float32).at[dst, src].add(norm)
    return adj


def build_mean_pool_matrix(batch, num_nodes, num_graphs):
    """P[b, n] = 1/|{m : batch[m]==b}| if batch[n]==b else 0."""
    one_hot = (batch[None, :] == jnp.arange(num_graphs)[:, None]).astype(jnp.float32)
    counts = jnp.maximum(one_hot.sum(axis=1, keepdims=True), 1.0)
    return one_hot / counts


def _block_diag(blocks):
    """(B, R, C) -> (B*R, B*C) block-diagonal matrix."""
    b, r, c = blocks.shape
    eye = jnp.eye(b, dtype=blocks.dtype)
    return jnp.einsum("brc,bk->brkc", blocks, eye).reshape(b * r, b * c)


# ----------------------------- parameters -----------------------------

def init_params(key):
    ks = jax.random.split(key, 10)
    def lin(kw, kb, fan_in, fan_out):
        bound = 1.0 / jnp.sqrt(fan_in)
        w = jax.random.uniform(kw, (fan_in, fan_out), jnp.float32, -bound, bound)
        b = jax.random.uniform(kb, (1, fan_out), jnp.float32, -bound, bound)
        return w, b
    w1, b1 = lin(ks[0], ks[1], NUM_NODE_FEATURES, GRAPH_HIDDEN)
    w2, b2 = lin(ks[2], ks[3], GRAPH_HIDDEN, GRAPH_HIDDEN)
    w3, b3 = lin(ks[4], ks[5], GRAPH_HIDDEN, GRAPH_HIDDEN)
    wm1, bm1 = lin(ks[6], ks[7], GRAPH_HIDDEN, NHID)
    wm2, bm2 = lin(ks[8], ks[9], NHID, NOUT)
    return (w1, b1, w2, b2, w3, b3, wm1, bm1, wm2, bm2)


def pack_params(params):
    """Pack into 2 lane-aligned slabs; fuse conv3's W3 with mol_hidden1's Wm1."""
    w1, b1, w2, b2, w3, b3, wm1, bm1, wm2, bm2 = params
    w1p = jnp.zeros((GRAPH_HIDDEN, GRAPH_HIDDEN), jnp.float32)
    w1p = w1p.at[:NUM_NODE_FEATURES, :].set(w1)            # pad fan_in 16 -> 32
    # No nonlinearity between conv3 and mol_hidden1 (dropout == identity):
    w3m = w3 @ wm1                                          # (32, 32)
    b3m = b3 @ wm1 + bm1                                    # (1, 32)
    wm2p = jnp.zeros((NHID, OUT_PAD), jnp.float32).at[:, :NOUT].set(wm2)
    bm2p = jnp.zeros((1, OUT_PAD), jnp.float32).at[:, :NOUT].set(bm2)
    w_slab = jnp.stack([w1p, w2, w3m, wm2p], axis=0)        # (4, 32, 32)
    b_slab = jnp.stack([b1, b2, b3m, bm2p], axis=0)         # (4, 1, 32)
    return w_slab, b_slab


# ----------------------------- forward -----------------------------

def graph_encoder_forward(x_b, edge_index_b, batch_b, params):
    """x_b: (NB,N,F), edge_index_b: (NB,2,E), batch_b: (NB,N)."""
    nb, n, f = x_b.shape

    adj = jax.vmap(build_normalized_adjacency, in_axes=(0, None))(
        edge_index_b, n)                                              # (NB,N,N)
    pool = jax.vmap(build_mean_pool_matrix, in_axes=(0, None, None))(
        batch_b, n, N_GRAPHS)                                         # (NB,G,N)
    padj = jnp.einsum("bgn,bnm->bgm", pool, adj)                      # (NB,G,N)

    # Block-diagonal packing: one fat shard (or 2 for v7x megacore).
    adj_big = jax.vmap(_block_diag)(
        adj.reshape(NUM_SHARDS, BATCHES_PER_SHARD, n, n))             # (S,BN,BN)
    padj_big = jax.vmap(_block_diag)(
        padj.reshape(NUM_SHARDS, BATCHES_PER_SHARD, N_GRAPHS, n))     # (S,BG,BN)
    x_pad = jnp.zeros((nb, n, F_PAD), jnp.float32).at[:, :, :f].set(x_b)
    x_big = x_pad.reshape(NUM_SHARDS, BN, F_PAD)                      # (S,BN,F)

    w_slab, b_slab = pack_params(params)

    # bf16 MXU operands (f32 accumulation inside the kernel); biases stay f32.
    adj_big = adj_big.astype(COMPUTE_DTYPE)
    padj_big = padj_big.astype(COMPUTE_DTYPE)
    x_big = x_big.astype(COMPUTE_DTYPE)
    w_slab = w_slab.astype(COMPUTE_DTYPE)

    nbytes = lambda a: a.size * a.dtype.itemsize
    flops = 2 * NUM_SHARDS * (
        BN * BN * F_PAD                      # adj @ x
        + BN * F_PAD * GRAPH_HIDDEN          # (adj x) @ W1
        + BN * GRAPH_HIDDEN * GRAPH_HIDDEN   # h @ W2
        + BN * BN * GRAPH_HIDDEN             # adj @ (h W2)
        + BG * BN * GRAPH_HIDDEN             # padj @ h
        + 2 * BG * GRAPH_HIDDEN * GRAPH_HIDDEN)  # g @ W3m, g @ Wm2
    bytes_accessed = (nbytes(adj_big) + nbytes(padj_big) + nbytes(x_big)
                      + nbytes(w_slab) + nbytes(b_slab)
                      + NUM_SHARDS * BG * OUT_PAD * 4)

    out_pad = pl.pallas_call(
        graph_encoder_kernel,
        out_shape=jax.ShapeDtypeStruct((NUM_SHARDS, BG, OUT_PAD), jnp.float32),
        grid=(NUM_SHARDS,),
        in_specs=[
            pl.BlockSpec((1, BN, BN), lambda s: (s, 0, 0)),           # adj
            pl.BlockSpec((1, BG, BN), lambda s: (s, 0, 0)),           # pool @ adj
            pl.BlockSpec((1, BN, F_PAD), lambda s: (s, 0, 0)),        # x (padded)
            # parameters: same block every step -> DMA'd once, VMEM-resident
            pl.BlockSpec((N_W, GRAPH_HIDDEN, GRAPH_HIDDEN), lambda s: (0, 0, 0)),
            pl.BlockSpec((N_W, 1, GRAPH_HIDDEN), lambda s: (0, 0, 0)),
        ],
        out_specs=pl.BlockSpec((1, BG, OUT_PAD), lambda s: (s, 0, 0)),
        compiler_params=pltpu.CompilerParams(dimension_semantics=("parallel",)),
        cost_estimate=pl.CostEstimate(flops=int(flops),
                                      bytes_accessed=int(bytes_accessed),
                                      transcendentals=0),
    )(adj_big, padj_big, x_big, w_slab, b_slab)

    out = out_pad.reshape(NUM_BATCHES, N_GRAPHS, OUT_PAD)
    return out[:, :, :NOUT]


# ----------------------------- reference (f32, unfused) -----------------------------

def _single_reference(x, edge_index, batch, params):
    (w1, b1, w2, b2, w3, b3, wm1, bm1, wm2, bm2) = params
    adj = build_normalized_adjacency(edge_index, x.shape[0])
    pool = build_mean_pool_matrix(batch, x.shape[0], N_GRAPHS)
    h = jnp.maximum(adj @ (x @ w1) + b1, 0.0)
    h = jnp.maximum(adj @ (h @ w2) + b2, 0.0)
    h = adj @ (h @ w3) + b3
    g = pool @ h
    g = jnp.maximum(g @ wm1 + bm1, 0.0)
    return g @ wm2 + bm2


def graph_encoder_reference(x_b, edge_index_b, batch_b, params):
    return jax.vmap(lambda x, e, bt: _single_reference(x, e, bt, params))(
        x_b, edge_index_b, batch_b)


if __name__ == "__main__":
    key = jax.random.PRNGKey(0)
    k_x, k_e, k_p = jax.random.split(key, 3)

    # node features for NUM_BATCHES independent graph-batches
    x_b = jax.random.normal(
        k_x, (NUM_BATCHES, N_NODES, NUM_NODE_FEATURES), jnp.float32)
    # random directed edges (edge_index: [2,E], row0=src, row1=dst)
    edge_index_b = jax.random.randint(
        k_e, (NUM_BATCHES, 2, N_EDGES), 0, N_NODES, jnp.int32)
    # batch assignment: first half of nodes -> graph 0, second half -> graph 1
    batch = jnp.concatenate([
        jnp.zeros(N_NODES // 2, jnp.int32),
        jnp.ones(N_NODES - N_NODES // 2, jnp.int32),
    ])
    batch_b = jnp.tile(batch[None, :], (NUM_BATCHES, 1))

    params = init_params(k_p)

    out = graph_encoder_forward(x_b, edge_index_b, batch_b, params)
    out = jax.block_until_ready(out)

    ref = graph_encoder_reference(x_b, edge_index_b, batch_b, params)
    assert out.shape == (NUM_BATCHES, N_GRAPHS, NOUT)
    # strict tolerance for f32, bf16-appropriate tolerance otherwise
    tol = 1e-4 if COMPUTE_DTYPE == jnp.float32 else 2e-2
    assert jnp.allclose(out, ref, atol=tol, rtol=tol), (out, ref)

    print("KERNEL_OK")
</pallas_src>

<mosaic_0001>
module attributes {stable_mosaic.version = 11 : i64} {
  func.func @graph_encoder_kernel(%arg0: i32, %arg1: memref<1x128x128xbf16, #tpu.memory_space<vmem>>, %arg2: memref<1x16x128xbf16, #tpu.memory_space<vmem>>, %arg3: memref<1x128x32xbf16, #tpu.memory_space<vmem>>, %arg4: memref<4x32x32xbf16, #tpu.memory_space<vmem>>, %arg5: memref<4x1x32xf32, #tpu.memory_space<vmem>>, %arg6: memref<1x16x32xf32, #tpu.memory_space<vmem>>) attributes {dimension_semantics = [#tpu.dimension_semantics<parallel>], iteration_bounds = array<i64: 1>, scalar_prefetch = 0 : i64, scratch_operands = 0 : i64, tpu.core_type = #tpu.core_type<tc>, window_params = [{transform_indices = @transform_0, window_bounds = array<i64: 1, 128, 128>}, {transform_indices = @transform_1, window_bounds = array<i64: 1, 16, 128>}, {transform_indices = @transform_2, window_bounds = array<i64: 1, 128, 32>}, {pipeline_mode = #tpu.pipeline_mode<synchronous>, transform_indices = @transform_3, window_bounds = array<i64: 4, 32, 32>}, {pipeline_mode = #tpu.pipeline_mode<synchronous>, transform_indices = @transform_4, window_bounds = array<i64: 4, 1, 32>}, {transform_indices = @transform_5, window_bounds = array<i64: 1, 16, 32>}]} {
    %c0 = arith.constant 0 : index
    %c0_0 = arith.constant 0 : index
    %c0_1 = arith.constant 0 : index
    %0 = vector.load %arg1[%c0, %c0_0, %c0_1] : memref<1x128x128xbf16, #tpu.memory_space<vmem>>, vector<1x128x128xbf16>
    %1 = vector.shape_cast %0 : vector<1x128x128xbf16> to vector<128x128xbf16>
    %c0_2 = arith.constant 0 : index
    %c0_3 = arith.constant 0 : index
    %c0_4 = arith.constant 0 : index
    %2 = vector.load %arg2[%c0_2, %c0_3, %c0_4] : memref<1x16x128xbf16, #tpu.memory_space<vmem>>, vector<1x16x128xbf16>
    %3 = vector.shape_cast %2 : vector<1x16x128xbf16> to vector<16x128xbf16>
    %c0_5 = arith.constant 0 : index
    %c0_6 = arith.constant 0 : index
    %c0_7 = arith.constant 0 : index
    %4 = vector.load %arg3[%c0_5, %c0_6, %c0_7] : memref<1x128x32xbf16, #tpu.memory_space<vmem>>, vector<1x128x32xbf16>
    %5 = vector.shape_cast %4 : vector<1x128x32xbf16> to vector<128x32xbf16>
    %cst = arith.constant dense<0.000000e+00> : vector<128x32xf32>
    %6 = tpu.matmul %1, %5, %cst {dimension_numbers = #tpu.dot_dimension_numbers<[1], [0], [0], [1], [0, 0, 1, 1], [], []>} : vector<128x128xbf16>, vector<128x32xbf16>, vector<128x32xf32> -> vector<128x32xf32>
    %7 = arith.truncf %6 : vector<128x32xf32> to vector<128x32xbf16>
    %c0_8 = arith.constant 0 : index
    %c0_9 = arith.constant 0 : index
    %c0_10 = arith.constant 0 : index
    %8 = vector.load %arg4[%c0_8, %c0_9, %c0_10] : memref<4x32x32xbf16, #tpu.memory_space<vmem>>, vector<1x32x32xbf16>
    %9 = vector.shape_cast %8 : vector<1x32x32xbf16> to vector<32x32xbf16>
    %cst_11 = arith.constant dense<0.000000e+00> : vector<128x32xf32>
    %10 = tpu.matmul %7, %9, %cst_11 {dimension_numbers = #tpu.dot_dimension_numbers<[1], [0], [0], [1], [0, 0, 1, 1], [], []>} : vector<128x32xbf16>, vector<32x32xbf16>, vector<128x32xf32> -> vector<128x32xf32>
    %c0_12 = arith.constant 0 : index
    %c0_13 = arith.constant 0 : index
    %c0_14 = arith.constant 0 : index
    %11 = vector.load %arg5[%c0_12, %c0_13, %c0_14] : memref<4x1x32xf32, #tpu.memory_space<vmem>>, vector<1x1x32xf32>
    %12 = vector.shape_cast %11 : vector<1x1x32xf32> to vector<1x32xf32>
    %13 = vector.broadcast %12 : vector<1x32xf32> to vector<128x32xf32>
    %14 = arith.addf %10, %13 : vector<128x32xf32>
    %cst_15 = arith.constant 0.000000e+00 : f32
    %15 = vector.broadcast %cst_15 : f32 to vector<128x32xf32>
    %16 = arith.maximumf %14, %15 : vector<128x32xf32>
    %17 = arith.truncf %16 : vector<128x32xf32> to vector<128x32xbf16>
    %c1 = arith.constant 1 : index
    %c0_16 = arith.constant 0 : index
    %c0_17 = arith.constant 0 : index
    %18 = vector.load %arg4[%c1, %c0_16, %c0_17] : memref<4x32x32xbf16, #tpu.memory_space<vmem>>, vector<1x32x32xbf16>
    %19 = vector.shape_cast %18 : vector<1x32x32xbf16> to vector<32x32xbf16>
    %cst_18 = arith.constant dense<0.000000e+00> : vector<128x32xf32>
    %20 = tpu.matmul %17, %19, %cst_18 {dimension_numbers = #tpu.dot_dimension_numbers<[1], [0], [0], [1], [0, 0, 1, 1], [], []>} : vector<128x32xbf16>, vector<32x32xbf16>, vector<128x32xf32> -> vector<128x32xf32>
    %21 = arith.truncf %20 : vector<128x32xf32> to vector<128x32xbf16>
    %cst_19 = arith.constant dense<0.000000e+00> : vector<128x32xf32>
    %22 = tpu.matmul %1, %21, %cst_19 {dimension_numbers = #tpu.dot_dimension_numbers<[1], [0], [0], [1], [0, 0, 1, 1], [], []>} : vector<128x128xbf16>, vector<128x32xbf16>, vector<128x32xf32> -> vector<128x32xf32>
    %c1_20 = arith.constant 1 : index
    %c0_21 = arith.constant 0 : index
    %c0_22 = arith.constant 0 : index
    %23 = vector.load %arg5[%c1_20, %c0_21, %c0_22] : memref<4x1x32xf32, #tpu.memory_space<vmem>>, vector<1x1x32xf32>
    %24 = vector.shape_cast %23 : vector<1x1x32xf32> to vector<1x32xf32>
    %25 = vector.broadcast %24 : vector<1x32xf32> to vector<128x32xf32>
    %26 = arith.addf %22, %25 : vector<128x32xf32>
    %cst_23 = arith.constant 0.000000e+00 : f32
    %27 = vector.broadcast %cst_23 : f32 to vector<128x32xf32>
    %28 = arith.maximumf %26, %27 : vector<128x32xf32>
    %29 = arith.truncf %28 : vector<128x32xf32> to vector<128x32xbf16>
    %cst_24 = arith.constant dense<0.000000e+00> : vector<16x32xf32>
    %30 = tpu.matmul %3, %29, %cst_24 {dimension_numbers = #tpu.dot_dimension_numbers<[1], [0], [0], [1], [0, 0, 1, 1], [], []>} : vector<16x128xbf16>, vector<128x32xbf16>, vector<16x32xf32> -> vector<16x32xf32>
    %31 = arith.truncf %30 : vector<16x32xf32> to vector<16x32xbf16>
    %c2 = arith.constant 2 : index
    %c0_25 = arith.constant 0 : index
    %c0_26 = arith.constant 0 : index
    %32 = vector.load %arg4[%c2, %c0_25, %c0_26] : memref<4x32x32xbf16, #tpu.memory_space<vmem>>, vector<1x32x32xbf16>
    %33 = vector.shape_cast %32 : vector<1x32x32xbf16> to vector<32x32xbf16>
    %cst_27 = arith.constant dense<0.000000e+00> : vector<16x32xf32>
    %34 = tpu.matmul %31, %33, %cst_27 {dimension_numbers = #tpu.dot_dimension_numbers<[1], [0], [0], [1], [0, 0, 1, 1], [], []>} : vector<16x32xbf16>, vector<32x32xbf16>, vector<16x32xf32> -> vector<16x32xf32>
    %c2_28 = arith.constant 2 : index
    %c0_29 = arith.constant 0 : index
    %c0_30 = arith.constant 0 : index
    %35 = vector.load %arg5[%c2_28, %c0_29, %c0_30] : memref<4x1x32xf32, #tpu.memory_space<vmem>>, vector<1x1x32xf32>
    %36 = vector.shape_cast %35 : vector<1x1x32xf32> to vector<1x32xf32>
    %37 = vector.broadcast %36 : vector<1x32xf32> to vector<16x32xf32>
    %38 = arith.addf %34, %37 : vector<16x32xf32>
    %cst_31 = arith.constant 0.000000e+00 : f32
    %39 = vector.broadcast %cst_31 : f32 to vector<16x32xf32>
    %40 = arith.maximumf %38, %39 : vector<16x32xf32>
    %41 = arith.truncf %40 : vector<16x32xf32> to vector<16x32xbf16>
    %c3 = arith.constant 3 : index
    %c0_32 = arith.constant 0 : index
    %c0_33 = arith.constant 0 : index
    %42 = vector.load %arg4[%c3, %c0_32, %c0_33] : memref<4x32x32xbf16, #tpu.memory_space<vmem>>, vector<1x32x32xbf16>
    %43 = vector.shape_cast %42 : vector<1x32x32xbf16> to vector<32x32xbf16>
    %cst_34 = arith.constant dense<0.000000e+00> : vector<16x32xf32>
    %44 = tpu.matmul %41, %43, %cst_34 {dimension_numbers = #tpu.dot_dimension_numbers<[1], [0], [0], [1], [0, 0, 1, 1], [], []>} : vector<16x32xbf16>, vector<32x32xbf16>, vector<16x32xf32> -> vector<16x32xf32>
    %c3_35 = arith.constant 3 : index
    %c0_36 = arith.constant 0 : index
    %c0_37 = arith.constant 0 : index
    %45 = vector.load %arg5[%c3_35, %c0_36, %c0_37] : memref<4x1x32xf32, #tpu.memory_space<vmem>>, vector<1x1x32xf32>
    %46 = vector.shape_cast %45 : vector<1x1x32xf32> to vector<1x32xf32>
    %47 = vector.broadcast %46 : vector<1x32xf32> to vector<16x32xf32>
    %48 = arith.addf %44, %47 : vector<16x32xf32>
    %c0_38 = arith.constant 0 : index
    %c0_39 = arith.constant 0 : index
    %c0_40 = arith.constant 0 : index
    %49 = vector.load %arg6[%c0_38, %c0_39, %c0_40] : memref<1x16x32xf32, #tpu.memory_space<vmem>>, vector<1x16x32xf32>
    %50 = vector.shape_cast %49 : vector<1x16x32xf32> to vector<16x32xf32>
    %51 = vector.shape_cast %48 : vector<16x32xf32> to vector<1x16x32xf32>
    tpu.vector_store %arg6[%c0_38, %c0_39, %c0_40], %51 {strides = array<i32>} : memref<1x16x32xf32, #tpu.memory_space<vmem>>, vector<1x16x32xf32>,
    return
  }
  func.func @transform_0(%arg0: i32) -> (i32, i32, i32) {
    %c0_i32 = arith.constant 0 : i32
    %c0_i32_0 = arith.constant 0 : i32
    %c0_i32_1 = arith.constant 0 : i32
    return %arg0, %c0_i32, %c0_i32_0 : i32, i32, i32
  }
  func.func @transform_1(%arg0: i32) -> (i32, i32, i32) {
    %c0_i32 = arith.constant 0 : i32
    %c0_i32_0 = arith.constant 0 : i32
    %c0_i32_1 = arith.constant 0 : i32
    return %arg0, %c0_i32, %c0_i32_0 : i32, i32, i32
  }
  func.func @transform_2(%arg0: i32) -> (i32, i32, i32) {
    %c0_i32 = arith.constant 0 : i32
    %c0_i32_0 = arith.constant 0 : i32
    %c0_i32_1 = arith.constant 0 : i32
    return %arg0, %c0_i32, %c0_i32_0 : i32, i32, i32
  }
  func.func @transform_3(%arg0: i32) -> (i32, i32, i32) {
    %c0_i32 = arith.constant 0 : i32
    %c0_i32_0 = arith.constant 0 : i32
    %c0_i32_1 = arith.constant 0 : i32
    %c0_i32_2 = arith.constant 0 : i32
    return %c0_i32, %c0_i32_0, %c0_i32_1 : i32, i32, i32
  }
  func.func @transform_4(%arg0: i32) -> (i32, i32, i32) {
    %c0_i32 = arith.constant 0 : i32
    %c0_i32_0 = arith.constant 0 : i32
    %c0_i32_1 = arith.constant 0 : i32
    %c0_i32_2 = arith.constant 0 : i32
    return %c0_i32, %c0_i32_0, %c0_i32_1 : i32, i32, i32
  }
  func.func @transform_5(%arg0: i32) -> (i32, i32, i32) {
    %c0_i32 = arith.constant 0 : i32
    %c0_i32_0 = arith.constant 0 : i32
    %c0_i32_1 = arith.constant 0 : i32
    return %arg0, %c0_i32, %c0_i32_0 : i32, i32, i32
  }
}

</mosaic_0001>

<llo_original>
// kernel: tpu_custom_call.1
$region0: #{tpu_custom_call.1}
  #allocation0 [shape = 'u32[]', space=smem, size = 0x4, offset = 0x4, fixed_abs, tag = 'smem constant byte address 0x4 - core index']
  #allocation1 [shape = 'u32[144,128]{1,0:T(1,128)}', space=vmem, size = 0x12000, scoped, tag = 'internal scratch']
  %s0 = inlined_call_operand.vmem [shape: bf16[1,128,128], index: 0, kind: input, shape index: {}]
  %s1 = inlined_call_operand.vmem [shape: bf16[1,16,128], index: 1, kind: input, shape index: {}]
  %s2 = inlined_call_operand.vmem [shape: bf16[1,128,32], index: 2, kind: input, shape index: {}]
  %s3 = inlined_call_operand.hbm [shape: bf16[4,32,32], index: 3, kind: input, shape index: {}]
  %s4 = inlined_call_operand.vmem [shape: f32[4,1,32], index: 4, kind: input, shape index: {}]
  %s5 = inlined_call_operand.hbm [shape: f32[1,16,32], index: 5, kind: output, shape index: {}]
  %s6 = sld [smem:[#allocation0]]
  $region34: #{tpu_custom_call.1} parent=0
    _
  %s8 = ssub.s32 1, %s6
  %s9 = scalar_select 0, %s8, %s6
  $region1: #{tpu_custom_call.1} parent=0
    #allocation2 [shape = 'u8[32768]{0}', space=vmem, size = 0x8000, scoped, tag = 'input window, operand 3, single buffered']
    #allocation3 [shape = 's32[1]{0}', space=sflag, size = 0x4, scoped, tag = 'scoped memory for tpu_custom_call.1']
    #allocation4 [shape = 's32[1]{0}', space=sflag, size = 0x4, scoped, tag = 'scoped memory for tpu_custom_call.1']
    #allocation5 [shape = 'u8[8192]{0}', space=vmem, size = 0x2000, scoped, tag = 'output window, operand 0, single buffered']
    %10 = vsyncpa [#allocation3], 0
    %11 = vsyncpa [#allocation4], 0
    // Predicated region
    $region2: #{tpu_custom_call.1} parent=1 // pred_check
      _
    $region3: #{tpu_custom_call.1} parent=1 // pred_check_branch
      %13 = sbr.rel (0) target = $region5
    $region4: #{tpu_custom_call.1} parent=1 // pred_region
      _
    $region5: #{tpu_custom_call.1} parent=1 // pred_fallthru
      _
    // Predicated region
    $region6: #{tpu_custom_call.1} parent=1 // pred_check
      _
    $region7: #{tpu_custom_call.1} parent=1 // pred_check_branch
      %15 = sbr.rel (0) target = $region9
    $region8: #{tpu_custom_call.1} parent=1 // pred_region
      _
    $region9: #{tpu_custom_call.1} parent=1 // pred_fallthru
      _
    // Predicated region
    $region10: #{tpu_custom_call.1} parent=1 // pred_check
      _
    $region11: #{tpu_custom_call.1} parent=1 // pred_check_branch
      %17 = sbr.rel (0) target = $region13
    $region12: #{tpu_custom_call.1} parent=1 // pred_region
      _
    $region13: #{tpu_custom_call.1} parent=1 // pred_fallthru
      _
    // Predicated region
    $region14: #{tpu_custom_call.1} parent=1 // pred_check
      _
    $region15: #{tpu_custom_call.1} parent=1 // pred_check_branch
      %19 = sbr.rel (0) target = $region17
    $region16: #{tpu_custom_call.1} parent=1 // pred_region
      %s21 = ssub.s32 1024, 1024
      %22 = vsyncadd [#allocation3], %s21
      %s23 = sshll.u32 [#allocation2], 4
      %s24 = int_to_ptr.vmem [resolvable:$true] %s23
      %29 = dma.hbm_to_vmem [thread:$0]  %s3, 1024, %s24, [#allocation3], 64, 64, 4
    $region17: #{tpu_custom_call.1} parent=1 // pred_fallthru
      _
    // Predicated region
    $region18: #{tpu_custom_call.1} parent=1 // pred_check
      _
    $region19: #{tpu_custom_call.1} parent=1 // pred_check_branch
      %31 = sbr.rel (0) target = $region21
    $region20: #{tpu_custom_call.1} parent=1 // pred_region
      _
    $region21: #{tpu_custom_call.1} parent=1 // pred_fallthru
      _
    // Predicated region
    $region22: #{tpu_custom_call.1} parent=1 // pred_check
      _
    $region23: #{tpu_custom_call.1} parent=1 // pred_check_branch
      %33 = sbr.rel (0) target = $region25
    $region24: #{tpu_custom_call.1} parent=1 // pred_region
      %34 = dma.done [#allocation3], 1024
    $region25: #{tpu_custom_call.1} parent=1 // pred_fallthru
      _
    %v36 = vld [vmem:[%s0] sm:$0xf]
    %v37 = vld [vmem:[%s0 + $0x4] sm:$0xf]
    %v38 = vld [vmem:[%s0 + $0x8] sm:$0xf]
    %v39 = vld [vmem:[%s0 + $0xc] sm:$0xf]
    %v40 = vld [vmem:[%s0 + $0x10] sm:$0xf]
    %v41 = vld [vmem:[%s0 + $0x14] sm:$0xf]
    %v42 = vld [vmem:[%s0 + $0x18] sm:$0xf]
    %v43 = vld [vmem:[%s0 + $0x1c] sm:$0xf]
    %v44 = vld [vmem:[%s0 + $0x20] sm:$0xf]
    %v45 = vld [vmem:[%s0 + $0x24] sm:$0xf]
    %v46 = vld [vmem:[%s0 + $0x28] sm:$0xf]
    %v47 = vld [vmem:[%s0 + $0x2c] sm:$0xf]
    %v48 = vld [vmem:[%s0 + $0x30] sm:$0xf]
    %v49 = vld [vmem:[%s0 + $0x34] sm:$0xf]
    %v50 = vld [vmem:[%s0 + $0x38] sm:$0xf]
    %v51 = vld [vmem:[%s0 + $0x3c] sm:$0xf]
    %v52 = vld [vmem:[%s1] sm:$0xf]
    %v53 = vld [vmem:[%s1 + $0x4] sm:$0xf]
    %v54 = vld [vmem:[%s2] sm:$0xf]
    %v55 = vld [vmem:[%s2 + $0x4] sm:$0xf]
    %v56 = vld [vmem:[%s2 + $0x8] sm:$0xf]
    %v57 = vld [vmem:[%s2 + $0xc] sm:$0xf]
    %v58 = vld [vmem:[%s2 + $0x10] sm:$0xf]
    %v59 = vld [vmem:[%s2 + $0x14] sm:$0xf]
    %v60 = vld [vmem:[%s2 + $0x18] sm:$0xf]
    %v61 = vld [vmem:[%s2 + $0x1c] sm:$0xf]
    %v62 = vld [vmem:[%s2 + $0x20] sm:$0xf]
    %v63 = vld [vmem:[%s2 + $0x24] sm:$0xf]
    %v64 = vld [vmem:[%s2 + $0x28] sm:$0xf]
    %v65 = vld [vmem:[%s2 + $0x2c] sm:$0xf]
    %v66 = vld [vmem:[%s2 + $0x30] sm:$0xf]
    %v67 = vld [vmem:[%s2 + $0x34] sm:$0xf]
    %v68 = vld [vmem:[%s2 + $0x38] sm:$0xf]
    %v69 = vld [vmem:[%s2 + $0x3c] sm:$0xf]
    %v86 = vunpack.c.l.b16 %v36
    %v87 = vunpack.c.l.b16 %v37
    %v88 = vunpack.c.l.b16 %v38
    %v89 = vunpack.c.l.b16 %v39
    %v90 = vunpack.c.l.b16 %v40
    %v91 = vunpack.c.l.b16 %v41
    %v92 = vunpack.c.l.b16 %v42
    %v93 = vunpack.c.l.b16 %v43
    %v94 = vunpack.c.l.b16 %v44
    %v95 = vunpack.c.l.b16 %v45
    %v96 = vunpack.c.l.b16 %v46
    %v97 = vunpack.c.l.b16 %v47
    %v98 = vunpack.c.l.b16 %v48
    %v99 = vunpack.c.l.b16 %v49
    %v100 = vunpack.c.l.b16 %v50
    %v101 = vunpack.c.l.b16 %v51
    %v102 = vpack.c.b16 %v87, %v86
    %v103 = vpack.c.b16 %v89, %v88
    %v104 = vpack.c.b16 %v91, %v90
    %v105 = vpack.c.b16 %v93, %v92
    %v106 = vpack.c.b16 %v95, %v94
    %v107 = vpack.c.b16 %v97, %v96
    %v108 = vpack.c.b16 %v99, %v98
    %v109 = vpack.c.b16 %v101, %v100
    %v134 = vunpack.c.l.b16 %v54
    %v135 = vunpack.c.l.b16 %v55
    %v136 = vunpack.c.l.b16 %v56
    %v137 = vunpack.c.l.b16 %v57
    %v138 = vunpack.c.l.b16 %v58
    %v139 = vunpack.c.l.b16 %v59
    %v140 = vunpack.c.l.b16 %v60
    %v141 = vunpack.c.l.b16 %v61
    %v142 = vunpack.c.l.b16 %v62
    %v143 = vunpack.c.l.b16 %v63
    %v144 = vunpack.c.l.b16 %v64
    %v145 = vunpack.c.l.b16 %v65
    %v146 = vunpack.c.l.b16 %v66
    %v147 = vunpack.c.l.b16 %v67
    %v148 = vunpack.c.l.b16 %v68
    %v149 = vunpack.c.l.b16 %v69
    %v150 = vpack.c.b16 %v135, %v134
    %v151 = vpack.c.b16 %v137, %v136
    %v152 = vpack.c.b16 %v139, %v138
    %v153 = vpack.c.b16 %v141, %v140
    %v154 = vpack.c.b16 %v143, %v142
    %v155 = vpack.c.b16 %v145, %v144
    %v156 = vpack.c.b16 %v147, %v146
    %v157 = vpack.c.b16 %v149, %v148
    %166 = vmatprep.subr.bf16.mxu0 0
    %167 = vmatpush1.bf16.msra.mxu0 %v150
    %168 = vmatprep.subr.bf16.mxu0 0
    %169 = vmatpush1.bf16.msra.mxu0 %v151
    %170 = vmatprep.subr.bf16.mxu0 0
    %171 = vmatpush1.bf16.msra.mxu0 %v152
    %172 = vmatprep.subr.bf16.mxu0 0
    %173 = vmatpush1.bf16.msra.mxu0 %v153
    %174 = vmatprep.subr.bf16.mxu0 0
    %175 = vmatpush1.bf16.msra.mxu0 %v154
    %176 = vmatprep.subr.bf16.mxu0 0
    %177 = vmatpush1.bf16.msra.mxu0 %v155
    %178 = vmatprep.subr.bf16.mxu0 0
    %179 = vmatpush1.bf16.msra.mxu0 %v156
    %180 = vmatprep.subr.bf16.mxu0 0
    %181 = vmatpush1.bf16.msra.mxu0 %v157
    %182 = vmatprep.subr.bf16.mxu0 0
    %183 = vmatpush1.bf16.msra.mxu0 0
    %184 = vmatprep.subr.bf16.mxu0 0
    %185 = vmatpush1.bf16.msra.mxu0 0
    %186 = vmatprep.subr.bf16.mxu0 0
    %187 = vmatpush1.bf16.msra.mxu0 0
    %188 = vmatprep.subr.bf16.mxu0 0
    %189 = vmatpush1.bf16.msra.mxu0 0
    %190 = vmatprep.subr.bf16.mxu0 0
    %191 = vmatpush1.bf16.msra.mxu0 0
    %192 = vmatprep.subr.bf16.mxu0 0
    %193 = vmatpush1.bf16.msra.mxu0 0
    %194 = vmatprep.subr.bf16.mxu0 0
    %195 = vmatpush1.bf16.msra.mxu0 0
    %196 = vmatprep.subr.bf16.mxu0 0
    %197 = vmatpush1.bf16.msra.mxu0 0
    %198 = vmatprep.mubr.bf16.mxu0 0
    %199 = vmatmul.mubr.bf16.gmra.mrb[0].mxu0 %v102
    %v200 = vpop.f32.mrb[0].mxu0
    %v201 = vadd.f32 0.0, %v200
    %v202 = vpop.f32.mrb[0].mxu0
    %v203 = vpop.f32.mrb[0].mxu0
    %v204 = vadd.f32 0.0, %v203
    %v205 = vpop.f32.mrb[0].mxu0
    %206 = vmatprep.mubr.bf16.mxu0 0
    %207 = vmatmul.mubr.bf16.gmra.mrb[0].mxu0 %v103
    %v208 = vpop.f32.mrb[0].mxu0
    %v209 = vadd.f32 0.0, %v208
    %v210 = vpop.f32.mrb[0].mxu0
    %v211 = vpop.f32.mrb[0].mxu0
    %v212 = vadd.f32 0.0, %v211
    %v213 = vpop.f32.mrb[0].mxu0
    %214 = vmatprep.mubr.bf16.mxu0 0
    %215 = vmatmul.mubr.bf16.gmra.mrb[0].mxu0 %v104
    %v216 = vpop.f32.mrb[0].mxu0
    %v217 = vadd.f32 0.0, %v216
    %v218 = vpop.f32.mrb[0].mxu0
    %v219 = vpop.f32.mrb[0].mxu0
    %v220 = vadd.f32 0.0, %v219
    %v221 = vpop.f32.mrb[0].mxu0
    %222 = vmatprep.mubr.bf16.mxu0 0
    %223 = vmatmul.mubr.bf16.gmra.mrb[0].mxu0 %v105
    %v224 = vpop.f32.mrb[0].mxu0
    %v225 = vadd.f32 0.0, %v224
    %v226 = vpop.f32.mrb[0].mxu0
    %v227 = vpop.f32.mrb[0].mxu0
    %v228 = vadd.f32 0.0, %v227
    %v229 = vpop.f32.mrb[0].mxu0
    %230 = vmatprep.mubr.bf16.mxu0 0
    %231 = vmatmul.mubr.bf16.gmra.mrb[0].mxu0 %v106
    %v232 = vpop.f32.mrb[0].mxu0
    %v233 = vadd.f32 0.0, %v232
    %v234 = vpop.f32.mrb[0].mxu0
    %v235 = vpop.f32.mrb[0].mxu0
    %v236 = vadd.f32 0.0, %v235
    %v237 = vpop.f32.mrb[0].mxu0
    %238 = vmatprep.mubr.bf16.mxu0 0
    %239 = vmatmul.mubr.bf16.gmra.mrb[0].mxu0 %v107
    %v240 = vpop.f32.mrb[0].mxu0
    %v241 = vadd.f32 0.0, %v240
    %v242 = vpop.f32.mrb[0].mxu0
    %v243 = vpop.f32.mrb[0].mxu0
    %v244 = vadd.f32 0.0, %v243
    %v245 = vpop.f32.mrb[0].mxu0
    %246 = vmatprep.mubr.bf16.mxu0 0
    %247 = vmatmul.mubr.bf16.gmra.mrb[0].mxu0 %v108
    %v248 = vpop.f32.mrb[0].mxu0
    %v249 = vadd.f32 0.0, %v248
    %v250 = vpop.f32.mrb[0].mxu0
    %v251 = vpop.f32.mrb[0].mxu0
    %v252 = vadd.f32 0.0, %v251
    %v253 = vpop.f32.mrb[0].mxu0
    %254 = vmatprep.mubr.bf16.mxu0 0
    %255 = vmatmul.mubr.bf16.gmra.mrb[0].mxu0 %v109
    %v256 = vpop.f32.mrb[0].mxu0
    %v257 = vadd.f32 0.0, %v256
    %v258 = vpop.f32.mrb[0].mxu0
    %v259 = vpop.f32.mrb[0].mxu0
    %v260 = vadd.f32 0.0, %v259
    %v261 = vpop.f32.mrb[0].mxu0
    %262 = vdwg.mxu0
    %v263 = vpack.c.bf16 %v204, %v201
    %v264 = vpack.c.bf16 %v212, %v209
    %v265 = vpack.c.bf16 %v220, %v217
    %v266 = vpack.c.bf16 %v228, %v225
    %v267 = vpack.c.bf16 %v236, %v233
    %v268 = vpack.c.bf16 %v244, %v241
    %v269 = vpack.c.bf16 %v252, %v249
    %v270 = vpack.c.bf16 %v260, %v257
    %v271 = vld [vmem:[#allocation2] sm:$0xf]
    %v272 = vld [vmem:[#allocation2 + $0x4] sm:$0xf]
    %v273 = vld [vmem:[#allocation2 + $0x8] sm:$0xf]
    %v274 = vld [vmem:[#allocation2 + $0xc] sm:$0xf]
    %v275 = vld [vmem:[%s4] sm:$0x1]
    %v277 = vlaneseq
    %v278 = vshrl.u32 %v277, 7
    %v279 = vsub.s32 0, %v278
    %v280 = vrot.slane %v275, %v279
    %v286 = vunpack.c.l.b16 %v271
    %v287 = vunpack.c.l.b16 %v272
    %v288 = vunpack.c.l.b16 %v273
    %v289 = vunpack.c.l.b16 %v274
    %v290 = vpack.c.b16 %v287, %v286
    %v291 = vpack.c.b16 %v289, %v288
    %vm294 = vcmask 261120
    %v296 = vsel %vm294, %v263, 0
    %v299 = vsel %vm294, %v264, 0
    %v302 = vsel %vm294, %v265, 0
    %v305 = vsel %vm294, %v266, 0
    %v308 = vsel %vm294, %v267, 0
    %v311 = vsel %vm294, %v268, 0
    %v314 = vsel %vm294, %v269, 0
    %v317 = vsel %vm294, %v270, 0
    %319 = vmatprep.subr.bf16.mxu0 0
    %320 = vmatpush1.bf16.msra.mxu0 %v290
    %321 = vmatprep.subr.bf16.mxu0 0
    %322 = vmatpush1.bf16.msra.mxu0 %v291
    %323 = vmatprep.subr.bf16.mxu0 0
    %324 = vmatpush1.bf16.msra.mxu0 0
    %325 = vmatprep.subr.bf16.mxu0 0
    %326 = vmatpush1.bf16.msra.mxu0 0
    %327 = vmatprep.subr.bf16.mxu0 0
    %328 = vmatpush1.bf16.msra.mxu0 0
    %329 = vmatprep.subr.bf16.mxu0 0
    %330 = vmatpush1.bf16.msra.mxu0 0
    %331 = vmatprep.subr.bf16.mxu0 0
    %332 = vmatpush1.bf16.msra.mxu0 0
    %333 = vmatprep.subr.bf16.mxu0 0
    %334 = vmatpush1.bf16.msra.mxu0 0
    %335 = vmatprep.subr.bf16.mxu0 0
    %336 = vmatpush1.bf16.msra.mxu0 0
    %337 = vmatprep.subr.bf16.mxu0 0
    %338 = vmatpush1.bf16.msra.mxu0 0
    %339 = vmatprep.subr.bf16.mxu0 0
    %340 = vmatpush1.bf16.msra.mxu0 0
    %341 = vmatprep.subr.bf16.mxu0 0
    %342 = vmatpush1.bf16.msra.mxu0 0
    %343 = vmatprep.subr.bf16.mxu0 0
    %344 = vmatpush1.bf16.msra.mxu0 0
    %345 = vmatprep.subr.bf16.mxu0 0
    %346 = vmatpush1.bf16.msra.mxu0 0
    %347 = vmatprep.subr.bf16.mxu0 0
    %348 = vmatpush1.bf16.msra.mxu0 0
    %349 = vmatprep.subr.bf16.mxu0 0
    %350 = vmatpush1.bf16.msra.mxu0 0
    %351 = vmatprep.mubr.bf16.mxu0 0
    %352 = vmatmul.mubr.bf16.gmra.mrb[0].mxu0 %v296
    %v353 = vpop.f32.mrb[0].mxu0
    %v354 = vadd.f32 %v280, %v353
    %v355 = vpop.f32.mrb[0].mxu0
    %v356 = vpop.f32.mrb[0].mxu0
    %v357 = vadd.f32 %v280, %v356
    %v358 = vpop.f32.mrb[0].mxu0
    %359 = vmatprep.mubr.bf16.mxu0 0
    %360 = vmatmul.mubr.bf16.gmra.mrb[0].mxu0 %v299
    %v361 = vpop.f32.mrb[0].mxu0
    %v362 = vadd.f32 %v280, %v361
    %v363 = vpop.f32.mrb[0].mxu0
    %v364 = vpop.f32.mrb[0].mxu0
    %v365 = vadd.f32 %v280, %v364
    %v366 = vpop.f32.mrb[0].mxu0
    %367 = vmatprep.mubr.bf16.mxu0 0
    %368 = vmatmul.mubr.bf16.gmra.mrb[0].mxu0 %v302
    %v369 = vpop.f32.mrb[0].mxu0
    %v370 = vadd.f32 %v280, %v369
    %v371 = vpop.f32.mrb[0].mxu0
    %v372 = vpop.f32.mrb[0].mxu0
    %v373 = vadd.f32 %v280, %v372
    %v374 = vpop.f32.mrb[0].mxu0
    %375 = vmatprep.mubr.bf16.mxu0 0
    %376 = vmatmul.mubr.bf16.gmra.mrb[0].mxu0 %v305
    %v377 = vpop.f32.mrb[0].mxu0
    %v378 = vadd.f32 %v280, %v377
    %v379 = vpop.f32.mrb[0].mxu0
    %v380 = vpop.f32.mrb[0].mxu0
    %v381 = vadd.f32 %v280, %v380
    %v382 = vpop.f32.mrb[0].mxu0
    %383 = vmatprep.mubr.bf16.mxu0 0
    %384 = vmatmul.mubr.bf16.gmra.mrb[0].mxu0 %v308
    %v385 = vpop.f32.mrb[0].mxu0
    %v386 = vadd.f32 %v280, %v385
    %v387 = vpop.f32.mrb[0].mxu0
    %v388 = vpop.f32.mrb[0].mxu0
    %v389 = vadd.f32 %v280, %v388
    %v390 = vpop.f32.mrb[0].mxu0
    %391 = vmatprep.mubr.bf16.mxu0 0
    %392 = vmatmul.mubr.bf16.gmra.mrb[0].mxu0 %v311
    %v393 = vpop.f32.mrb[0].mxu0
    %v394 = vadd.f32 %v280, %v393
    %v395 = vpop.f32.mrb[0].mxu0
    %v396 = vpop.f32.mrb[0].mxu0
    %v397 = vadd.f32 %v280, %v396
    %v398 = vpop.f32.mrb[0].mxu0
    %399 = vmatprep.mubr.bf16.mxu0 0
    %400 = vmatmul.mubr.bf16.gmra.mrb[0].mxu0 %v314
    %v401 = vpop.f32.mrb[0].mxu0
    %v402 = vadd.f32 %v280, %v401
    %v403 = vpop.f32.mrb[0].mxu0
    %v404 = vpop.f32.mrb[0].mxu0
    %v405 = vadd.f32 %v280, %v404
    %v406 = vpop.f32.mrb[0].mxu0
    %407 = vmatprep.mubr.bf16.mxu0 0
    %408 = vmatmul.mubr.bf16.gmra.mrb[0].mxu0 %v317
    %v409 = vpop.f32.mrb[0].mxu0
    %v410 = vadd.f32 %v280, %v409
    %v411 = vpop.f32.mrb[0].mxu0
    %v412 = vpop.f32.mrb[0].mxu0
    %v413 = vadd.f32 %v280, %v412
    %v414 = vpop.f32.mrb[0].mxu0
    %415 = vdwg.mxu0
    %v416 = vmax.f32 %v354, 0.0
    %v417 = vmax.f32 %v357, 0.0
    %v418 = vmax.f32 %v362, 0.0
    %v419 = vmax.f32 %v365, 0.0
    %v420 = vmax.f32 %v370, 0.0
    %v421 = vmax.f32 %v373, 0.0
    %v422 = vmax.f32 %v378, 0.0
    %v423 = vmax.f32 %v381, 0.0
    %v424 = vmax.f32 %v386, 0.0
    %v425 = vmax.f32 %v389, 0.0
    %v426 = vmax.f32 %v394, 0.0
    %v427 = vmax.f32 %v397, 0.0
    %v428 = vmax.f32 %v402, 0.0
    %v429 = vmax.f32 %v405, 0.0
    %v430 = vmax.f32 %v410, 0.0
    %v431 = vmax.f32 %v413, 0.0
    %v432 = vpack.c.bf16 %v417, %v416
    %v433 = vpack.c.bf16 %v419, %v418
    %v434 = vpack.c.bf16 %v421, %v420
    %v435 = vpack.c.bf16 %v423, %v422
    %v436 = vpack.c.bf16 %v425, %v424
    %v437 = vpack.c.bf16 %v427, %v426
    %v438 = vpack.c.bf16 %v429, %v428
    %v439 = vpack.c.bf16 %v431, %v430
    %s440 = scalar_lea.vmem [#allocation2], 16
    %v441 = vld [vmem:[%s440] sm:$0xf]
    %v442 = vld [vmem:[%s440 + $0x4] sm:$0xf]
    %v443 = vld [vmem:[%s440 + $0x8] sm:$0xf]
    %v444 = vld [vmem:[%s440 + $0xc] sm:$0xf]
    %v449 = vunpack.c.l.b16 %v441
    %v450 = vunpack.c.l.b16 %v442
    %v451 = vunpack.c.l.b16 %v443
    %v452 = vunpack.c.l.b16 %v444
    %v453 = vpack.c.b16 %v450, %v449
    %v454 = vpack.c.b16 %v452, %v451
    %v458 = vsel %vm294, %v432, 0
    %v461 = vsel %vm294, %v433, 0
    %v464 = vsel %vm294, %v434, 0
    %v467 = vsel %vm294, %v435, 0
    %v470 = vsel %vm294, %v436, 0
    %v473 = vsel %vm294, %v437, 0
    %v476 = vsel %vm294, %v438, 0
    %v479 = vsel %vm294, %v439, 0
    %481 = vmatprep.subr.bf16.mxu0 0
    %482 = vmatpush1.bf16.msra.mxu0 %v453
    %483 = vmatprep.subr.bf16.mxu0 0
    %484 = vmatpush1.bf16.msra.mxu0 %v454
    %485 = vmatprep.subr.bf16.mxu0 0
    %486 = vmatpush1.bf16.msra.mxu0 0
    %487 = vmatprep.subr.bf16.mxu0 0
    %488 = vmatpush1.bf16.msra.mxu0 0
    %489 = vmatprep.subr.bf16.mxu0 0
    %490 = vmatpush1.bf16.msra.mxu0 0
    %491 = vmatprep.subr.bf16.mxu0 0
    %492 = vmatpush1.bf16.msra.mxu0 0
    %493 = vmatprep.subr.bf16.mxu0 0
    %494 = vmatpush1.bf16.msra.mxu0 0
    %495 = vmatprep.subr.bf16.mxu0 0
    %496 = vmatpush1.bf16.msra.mxu0 0
    %497 = vmatprep.subr.bf16.mxu0 0
    %498 = vmatpush1.bf16.msra.mxu0 0
    %499 = vmatprep.subr.bf16.mxu0 0
    %500 = vmatpush1.bf16.msra.mxu0 0
    %501 = vmatprep.subr.bf16.mxu0 0
    %502 = vmatpush1.bf16.msra.mxu0 0
    %503 = vmatprep.subr.bf16.mxu0 0
    %504 = vmatpush1.bf16.msra.mxu0 0
    %505 = vmatprep.subr.bf16.mxu0 0
    %506 = vmatpush1.bf16.msra.mxu0 0
    %507 = vmatprep.subr.bf16.mxu0 0
    %508 = vmatpush1.bf16.msra.mxu0 0
    %509 = vmatprep.subr.bf16.mxu0 0
    %510 = vmatpush1.bf16.msra.mxu0 0
    %511 = vmatprep.subr.bf16.mxu0 0
    %512 = vmatpush1.bf16.msra.mxu0 0
    %513 = vmatprep.mubr.bf16.mxu0 0
    %514 = vmatmul.mubr.bf16.gmra.mrb[0].mxu0 %v458
    %v515 = vpop.f32.mrb[0].mxu0
    %v516 = vadd.f32 0.0, %v515
    %v517 = vpop.f32.mrb[0].mxu0
    %v518 = vpop.f32.mrb[0].mxu0
    %v519 = vadd.f32 0.0, %v518
    %v520 = vpop.f32.mrb[0].mxu0
    %521 = vmatprep.mubr.bf16.mxu0 0
    %522 = vmatmul.mubr.bf16.gmra.mrb[0].mxu0 %v461
    %v523 = vpop.f32.mrb[0].mxu0
    %v524 = vadd.f32 0.0, %v523
    %v525 = vpop.f32.mrb[0].mxu0
    %v526 = vpop.f32.mrb[0].mxu0
    %v527 = vadd.f32 0.0, %v526
    %v528 = vpop.f32.mrb[0].mxu0
    %529 = vmatprep.mubr.bf16.mxu0 0
    %530 = vmatmul.mubr.bf16.gmra.mrb[0].mxu0 %v464
    %v531 = vpop.f32.mrb[0].mxu0
    %v532 = vadd.f32 0.0, %v531
    %v533 = vpop.f32.mrb[0].mxu0
    %v534 = vpop.f32.mrb[0].mxu0
    %v535 = vadd.f32 0.0, %v534
    %v536 = vpop.f32.mrb[0].mxu0
    %537 = vmatprep.mubr.bf16.mxu0 0
    %538 = vmatmul.mubr.bf16.gmra.mrb[0].mxu0 %v467
    %v539 = vpop.f32.mrb[0].mxu0
    %v540 = vadd.f32 0.0, %v539
    %v541 = vpop.f32.mrb[0].mxu0
    %v542 = vpop.f32.mrb[0].mxu0
    %v543 = vadd.f32 0.0, %v542
    %v544 = vpop.f32.mrb[0].mxu0
    %545 = vmatprep.mubr.bf16.mxu0 0
    %546 = vmatmul.mubr.bf16.gmra.mrb[0].mxu0 %v470
    %v547 = vpop.f32.mrb[0].mxu0
    %v548 = vadd.f32 0.0, %v547
    %v549 = vpop.f32.mrb[0].mxu0
    %v550 = vpop.f32.mrb[0].mxu0
    %v551 = vadd.f32 0.0, %v550
    %v552 = vpop.f32.mrb[0].mxu0
    %553 = vmatprep.mubr.bf16.mxu0 0
    %554 = vmatmul.mubr.bf16.gmra.mrb[0].mxu0 %v473
    %v555 = vpop.f32.mrb[0].mxu0
    %v556 = vadd.f32 0.0, %v555
    %v557 = vpop.f32.mrb[0].mxu0
    %v558 = vpop.f32.mrb[0].mxu0
    %v559 = vadd.f32 0.0, %v558
    %v560 = vpop.f32.mrb[0].mxu0
    %561 = vmatprep.mubr.bf16.mxu0 0
    %562 = vmatmul.mubr.bf16.gmra.mrb[0].mxu0 %v476
    %v563 = vpop.f32.mrb[0].mxu0
    %v564 = vadd.f32 0.0, %v563
    %v565 = vpop.f32.mrb[0].mxu0
    %v566 = vpop.f32.mrb[0].mxu0
    %v567 = vadd.f32 0.0, %v566
    %v568 = vpop.f32.mrb[0].mxu0
    %569 = vmatprep.mubr.bf16.mxu0 0
    %570 = vmatmul.mubr.bf16.gmra.mrb[0].mxu0 %v479
    %v571 = vpop.f32.mrb[0].mxu0
    %v572 = vadd.f32 0.0, %v571
    %v573 = vpop.f32.mrb[0].mxu0
    %v574 = vpop.f32.mrb[0].mxu0
    %v575 = vadd.f32 0.0, %v574
    %v576 = vpop.f32.mrb[0].mxu0
    %577 = vdwg.mxu0
    %v578 = vpack.c.bf16 %v519, %v516
    %v579 = vpack.c.bf16 %v527, %v524
    %v580 = vpack.c.bf16 %v535, %v532
    %v581 = vpack.c.bf16 %v543, %v540
    %v582 = vpack.c.bf16 %v551, %v548
    %v583 = vpack.c.bf16 %v559, %v556
    %v584 = vpack.c.bf16 %v567, %v564
    %v585 = vpack.c.bf16 %v575, %v572
    %s586 = scalar_lea.vmem %s4, 1
    %v587 = vld [vmem:[%s586] sm:$0x1]
    %v589 = vlaneseq
    %v590 = vshrl.u32 %v589, 7
    %v591 = vsub.s32 0, %v590
    %v592 = vrot.slane %v587, %v591
    %594 = vmatprep.subr.bf16.mxu0 0
    %595 = vmatpush1.bf16.msra.mxu0 %v578
    %596 = vmatprep.subr.bf16.mxu0 0
    %597 = vmatpush1.bf16.msra.mxu0 %v579
    %598 = vmatprep.subr.bf16.mxu0 0
    %599 = vmatpush1.bf16.msra.mxu0 %v580
    %600 = vmatprep.subr.bf16.mxu0 0
    %601 = vmatpush1.bf16.msra.mxu0 %v581
    %602 = vmatprep.subr.bf16.mxu0 0
    %603 = vmatpush1.bf16.msra.mxu0 %v582
    %604 = vmatprep.subr.bf16.mxu0 0
    %605 = vmatpush1.bf16.msra.mxu0 %v583
    %606 = vmatprep.subr.bf16.mxu0 0
    %607 = vmatpush1.bf16.msra.mxu0 %v584
    %608 = vmatprep.subr.bf16.mxu0 0
    %609 = vmatpush1.bf16.msra.mxu0 %v585
    %610 = vmatprep.subr.bf16.mxu0 0
    %611 = vmatpush1.bf16.msra.mxu0 0
    %612 = vmatprep.subr.bf16.mxu0 0
    %613 = vmatpush1.bf16.msra.mxu0 0
    %614 = vmatprep.subr.bf16.mxu0 0
    %615 = vmatpush1.bf16.msra.mxu0 0
    %616 = vmatprep.subr.bf16.mxu0 0
    %617 = vmatpush1.bf16.msra.mxu0 0
    %618 = vmatprep.subr.bf16.mxu0 0
    %619 = vmatpush1.bf16.msra.mxu0 0
    %620 = vmatprep.subr.bf16.mxu0 0
    %621 = vmatpush1.bf16.msra.mxu0 0
    %622 = vmatprep.subr.bf16.mxu0 0
    %623 = vmatpush1.bf16.msra.mxu0 0
    %624 = vmatprep.subr.bf16.mxu0 0
    %625 = vmatpush1.bf16.msra.mxu0 0
    %626 = vmatprep.mubr.bf16.mxu0 0
    %627 = vmatmul.mubr.bf16.gmra.mrb[0].mxu0 %v102
    %v628 = vpop.f32.mrb[0].mxu0
    %v629 = vadd.f32 %v592, %v628
    %v630 = vpop.f32.mrb[0].mxu0
    %v631 = vpop.f32.mrb[0].mxu0
    %v632 = vadd.f32 %v592, %v631
    %v633 = vpop.f32.mrb[0].mxu0
    %634 = vmatprep.mubr.bf16.mxu0 0
    %635 = vmatmul.mubr.bf16.gmra.mrb[0].mxu0 %v103
    %v636 = vpop.f32.mrb[0].mxu0
    %v637 = vadd.f32 %v592, %v636
    %v638 = vpop.f32.mrb[0].mxu0
    %v639 = vpop.f32.mrb[0].mxu0
    %v640 = vadd.f32 %v592, %v639
    %v641 = vpop.f32.mrb[0].mxu0
    %642 = vmatprep.mubr.bf16.mxu0 0
    %643 = vmatmul.mubr.bf16.gmra.mrb[0].mxu0 %v104
    %v644 = vpop.f32.mrb[0].mxu0
    %v645 = vadd.f32 %v592, %v644
    %v646 = vpop.f32.mrb[0].mxu0
    %v647 = vpop.f32.mrb[0].mxu0
    %v648 = vadd.f32 %v592, %v647
    %v649 = vpop.f32.mrb[0].mxu0
    %650 = vmatprep.mubr.bf16.mxu0 0
    %651 = vmatmul.mubr.bf16.gmra.mrb[0].mxu0 %v105
    %v652 = vpop.f32.mrb[0].mxu0
    %v653 = vadd.f32 %v592, %v652
    %v654 = vpop.f32.mrb[0].mxu0
    %v655 = vpop.f32.mrb[0].mxu0
    %v656 = vadd.f32 %v592, %v655
    %v657 = vpop.f32.mrb[0].mxu0
    %658 = vmatprep.mubr.bf16.mxu0 0
    %659 = vmatmul.mubr.bf16.gmra.mrb[0].mxu0 %v106
    %v660 = vpop.f32.mrb[0].mxu0
    %v661 = vadd.f32 %v592, %v660
    %v662 = vpop.f32.mrb[0].mxu0
    %v663 = vpop.f32.mrb[0].mxu0
    %v664 = vadd.f32 %v592, %v663
    %v665 = vpop.f32.mrb[0].mxu0
    %666 = vmatprep.mubr.bf16.mxu0 0
    %667 = vmatmul.mubr.bf16.gmra.mrb[0].mxu0 %v107
    %v668 = vpop.f32.mrb[0].mxu0
    %v669 = vadd.f32 %v592, %v668
    %v670 = vpop.f32.mrb[0].mxu0
    %v671 = vpop.f32.mrb[0].mxu0
    %v672 = vadd.f32 %v592, %v671
    %v673 = vpop.f32.mrb[0].mxu0
    %674 = vmatprep.mubr.bf16.mxu0 0
    %675 = vmatmul.mubr.bf16.gmra.mrb[0].mxu0 %v108
    %v676 = vpop.f32.mrb[0].mxu0
    %v677 = vadd.f32 %v592, %v676
    %v678 = vpop.f32.mrb[0].mxu0
    %v679 = vpop.f32.mrb[0].mxu0
    %v680 = vadd.f32 %v592, %v679
    %v681 = vpop.f32.mrb[0].mxu0
    %682 = vmatprep.mubr.bf16.mxu0 0
    %683 = vmatmul.mubr.bf16.gmra.mrb[0].mxu0 %v109
    %v684 = vpop.f32.mrb[0].mxu0
    %v685 = vadd.f32 %v592, %v684
    %v686 = vpop.f32.mrb[0].mxu0
    %v687 = vpop.f32.mrb[0].mxu0
    %v688 = vadd.f32 %v592, %v687
    %v689 = vpop.f32.mrb[0].mxu0
    %690 = vdwg.mxu0
    %v691 = vmax.f32 %v629, 0.0
    %v692 = vmax.f32 %v632, 0.0
    %v693 = vmax.f32 %v637, 0.0
    %v694 = vmax.f32 %v640, 0.0
    %v695 = vmax.f32 %v645, 0.0
    %v696 = vmax.f32 %v648, 0.0
    %v697 = vmax.f32 %v653, 0.0
    %v698 = vmax.f32 %v656, 0.0
    %v699 = vmax.f32 %v661, 0.0
    %v700 = vmax.f32 %v664, 0.0
    %v701 = vmax.f32 %v669, 0.0
    %v702 = vmax.f32 %v672, 0.0
    %v703 = vmax.f32 %v677, 0.0
    %v704 = vmax.f32 %v680, 0.0
    %v705 = vmax.f32 %v685, 0.0
    %v706 = vmax.f32 %v688, 0.0
    %v707 = vpack.c.bf16 %v692, %v691
    %v708 = vpack.c.bf16 %v694, %v693
    %v709 = vpack.c.bf16 %v696, %v695
    %v710 = vpack.c.bf16 %v698, %v697
    %v711 = vpack.c.bf16 %v700, %v699
    %v712 = vpack.c.bf16 %v702, %v701
    %v713 = vpack.c.bf16 %v704, %v703
    %v714 = vpack.c.bf16 %v706, %v705
    %v717 = vunpack.c.l.b16 %v52
    %v718 = vunpack.c.l.b16 %v53
    %v719 = vpack.c.b16 %v718, %v717
    %721 = vmatprep.subr.bf16.mxu0 0
    %722 = vmatpush1.bf16.msra.mxu0 %v707
    %723 = vmatprep.subr.bf16.mxu0 0
    %724 = vmatpush1.bf16.msra.mxu0 %v708
    %725 = vmatprep.subr.bf16.mxu0 0
    %726 = vmatpush1.bf16.msra.mxu0 %v709
    %727 = vmatprep.subr.bf16.mxu0 0
    %728 = vmatpush1.bf16.msra.mxu0 %v710
    %729 = vmatprep.subr.bf16.mxu0 0
    %730 = vmatpush1.bf16.msra.mxu0 %v711
    %731 = vmatprep.subr.bf16.mxu0 0
    %732 = vmatpush1.bf16.msra.mxu0 %v712
    %733 = vmatprep.subr.bf16.mxu0 0
    %734 = vmatpush1.bf16.msra.mxu0 %v713
    %735 = vmatprep.subr.bf16.mxu0 0
    %736 = vmatpush1.bf16.msra.mxu0 %v714
    %737 = vmatprep.subr.bf16.mxu0 0
    %738 = vmatpush1.bf16.msra.mxu0 0
    %739 = vmatprep.subr.bf16.mxu0 0
    %740 = vmatpush1.bf16.msra.mxu0 0
    %741 = vmatprep.subr.bf16.mxu0 0
    %742 = vmatpush1.bf16.msra.mxu0 0
    %743 = vmatprep.subr.bf16.mxu0 0
    %744 = vmatpush1.bf16.msra.mxu0 0
    %745 = vmatprep.subr.bf16.mxu0 0
    %746 = vmatpush1.bf16.msra.mxu0 0
    %747 = vmatprep.subr.bf16.mxu0 0
    %748 = vmatpush1.bf16.msra.mxu0 0
    %749 = vmatprep.subr.bf16.mxu0 0
    %750 = vmatpush1.bf16.msra.mxu0 0
    %751 = vmatprep.subr.bf16.mxu0 0
    %752 = vmatpush1.bf16.msra.mxu0 0
    %753 = vmatprep.mubr.bf16.mxu0 0
    %754 = vmatmul.mubr.bf16.gmra.mrb[0].mxu0 %v719
    %v755 = vpop.f32.mrb[0].mxu0
    %v756 = vadd.f32 0.0, %v755
    %v757 = vpop.f32.mrb[0].mxu0
    %v758 = vpop.f32.mrb[0].mxu0
    %v759 = vadd.f32 0.0, %v758
    %v760 = vpop.f32.mrb[0].mxu0
    %761 = vdwg.mxu0
    %v762 = vpack.c.bf16 %v759, %v756
    %s763 = scalar_lea.vmem [#allocation2], 32
    %v764 = vld [vmem:[%s763] sm:$0xf]
    %v765 = vld [vmem:[%s763 + $0x4] sm:$0xf]
    %v766 = vld [vmem:[%s763 + $0x8] sm:$0xf]
    %v767 = vld [vmem:[%s763 + $0xc] sm:$0xf]
    %s768 = scalar_lea.vmem %s4, 2
    %v769 = vld [vmem:[%s768] sm:$0x1]
    %v771 = vlaneseq
    %v772 = vshrl.u32 %v771, 7
    %v773 = vsub.s32 0, %v772
    %v774 = vrot.slane %v769, %v773
    %v780 = vunpack.c.l.b16 %v764
    %v781 = vunpack.c.l.b16 %v765
    %v782 = vunpack.c.l.b16 %v766
    %v783 = vunpack.c.l.b16 %v767
    %v784 = vpack.c.b16 %v781, %v780
    %v785 = vpack.c.b16 %v783, %v782
    %v789 = vsel %vm294, %v762, 0
    %791 = vmatprep.subr.bf16.mxu0 0
    %792 = vmatpush1.bf16.msra.mxu0 %v784
    %793 = vmatprep.subr.bf16.mxu0 0
    %794 = vmatpush1.bf16.msra.mxu0 %v785
    %795 = vmatprep.subr.bf16.mxu0 0
    %796 = vmatpush1.bf16.msra.mxu0 0
    %797 = vmatprep.subr.bf16.mxu0 0
    %798 = vmatpush1.bf16.msra.mxu0 0
    %799 = vmatprep.subr.bf16.mxu0 0
    %800 = vmatpush1.bf16.msra.mxu0 0
    %801 = vmatprep.subr.bf16.mxu0 0
    %802 = vmatpush1.bf16.msra.mxu0 0
    %803 = vmatprep.subr.bf16.mxu0 0
    %804 = vmatpush1.bf16.msra.mxu0 0
    %805 = vmatprep.subr.bf16.mxu0 0
    %806 = vmatpush1.bf16.msra.mxu0 0
    %807 = vmatprep.subr.bf16.mxu0 0
    %808 = vmatpush1.bf16.msra.mxu0 0
    %809 = vmatprep.subr.bf16.mxu0 0
    %810 = vmatpush1.bf16.msra.mxu0 0
    %811 = vmatprep.subr.bf16.mxu0 0
    %812 = vmatpush1.bf16.msra.mxu0 0
    %813 = vmatprep.subr.bf16.mxu0 0
    %814 = vmatpush1.bf16.msra.mxu0 0
    %815 = vmatprep.subr.bf16.mxu0 0
    %816 = vmatpush1.bf16.msra.mxu0 0
    %817 = vmatprep.subr.bf16.mxu0 0
    %818 = vmatpush1.bf16.msra.mxu0 0
    %819 = vmatprep.subr.bf16.mxu0 0
    %820 = vmatpush1.bf16.msra.mxu0 0
    %821 = vmatprep.subr.bf16.mxu0 0
    %822 = vmatpush1.bf16.msra.mxu0 0
    %823 = vmatprep.mubr.bf16.mxu0 0
    %824 = vmatmul.mubr.bf16.gmra.mrb[0].mxu0 %v789
    %v825 = vpop.f32.mrb[0].mxu0
    %v826 = vadd.f32 %v774, %v825
    %v827 = vpop.f32.mrb[0].mxu0
    %v828 = vpop.f32.mrb[0].mxu0
    %v829 = vadd.f32 %v774, %v828
    %v830 = vpop.f32.mrb[0].mxu0
    %831 = vdwg.mxu0
    %v832 = vmax.f32 %v826, 0.0
    %v833 = vmax.f32 %v829, 0.0
    %v834 = vpack.c.bf16 %v833, %v832
    %s835 = scalar_lea.vmem [#allocation2], 48
    %v836 = vld [vmem:[%s835] sm:$0xf]
    %v837 = vld [vmem:[%s835 + $0x4] sm:$0xf]
    %v838 = vld [vmem:[%s835 + $0x8] sm:$0xf]
    %v839 = vld [vmem:[%s835 + $0xc] sm:$0xf]
    %s840 = scalar_lea.vmem %s4, 3
    %v841 = vld [vmem:[%s840] sm:$0x1]
    %v843 = vlaneseq
    %v844 = vshrl.u32 %v843, 7
    %v845 = vsub.s32 0, %v844
    %v846 = vrot.slane %v841, %v845
    %v852 = vunpack.c.l.b16 %v836
    %v853 = vunpack.c.l.b16 %v837
    %v854 = vunpack.c.l.b16 %v838
    %v855 = vunpack.c.l.b16 %v839
    %v856 = vpack.c.b16 %v853, %v852
    %v857 = vpack.c.b16 %v855, %v854
    %v861 = vsel %vm294, %v834, 0
    %863 = vmatprep.subr.bf16.mxu0 0
    %864 = vmatpush1.bf16.msra.mxu0 %v856
    %865 = vmatprep.subr.bf16.mxu0 0
    %866 = vmatpush1.bf16.msra.mxu0 %v857
    %867 = vmatprep.subr.bf16.mxu0 0
    %868 = vmatpush1.bf16.msra.mxu0 0
    %869 = vmatprep.subr.bf16.mxu0 0
    %870 = vmatpush1.bf16.msra.mxu0 0
    %871 = vmatprep.subr.bf16.mxu0 0
    %872 = vmatpush1.bf16.msra.mxu0 0
    %873 = vmatprep.subr.bf16.mxu0 0
    %874 = vmatpush1.bf16.msra.mxu0 0
    %875 = vmatprep.subr.bf16.mxu0 0
    %876 = vmatpush1.bf16.msra.mxu0 0
    %877 = vmatprep.subr.bf16.mxu0 0
    %878 = vmatpush1.bf16.msra.mxu0 0
    %879 = vmatprep.subr.bf16.mxu0 0
    %880 = vmatpush1.bf16.msra.mxu0 0
    %881 = vmatprep.subr.bf16.mxu0 0
    %882 = vmatpush1.bf16.msra.mxu0 0
    %883 = vmatprep.subr.bf16.mxu0 0
    %884 = vmatpush1.bf16.msra.mxu0 0
    %885 = vmatprep.subr.bf16.mxu0 0
    %886 = vmatpush1.bf16.msra.mxu0 0
    %887 = vmatprep.subr.bf16.mxu0 0
    %888 = vmatpush1.bf16.msra.mxu0 0
    %889 = vmatprep.subr.bf16.mxu0 0
    %890 = vmatpush1.bf16.msra.mxu0 0
    %891 = vmatprep.subr.bf16.mxu0 0
    %892 = vmatpush1.bf16.msra.mxu0 0
    %893 = vmatprep.subr.bf16.mxu0 0
    %894 = vmatpush1.bf16.msra.mxu0 0
    %895 = vmatprep.mubr.bf16.mxu0 0
    %896 = vmatmul.mubr.bf16.gmra.mrb[0].mxu0 %v861
    %v897 = vpop.f32.mrb[0].mxu0
    %v898 = vadd.f32 %v846, %v897
    %v899 = vpop.f32.mrb[0].mxu0
    %v900 = vpop.f32.mrb[0].mxu0
    %v901 = vadd.f32 %v846, %v900
    %v902 = vpop.f32.mrb[0].mxu0
    %903 = vdwg.mxu0
    %904 = vst.msk [vmem:[#allocation5] sm:$0xff] %vm294, %v898
    %905 = vst.msk [vmem:[#allocation5 + $0x8] sm:$0xff] %vm294, %v901
    // Predicated region
    $region26: #{tpu_custom_call.1} parent=1 // pred_check
      _
    $region27: #{tpu_custom_call.1} parent=1 // pred_check_branch
      %907 = sbr.rel (0) target = $region29
    $region28: #{tpu_custom_call.1} parent=1 // pred_region
      %s909 = ssub.s32 256, 256
      %910 = vsyncadd [#allocation4], %s909
      %s911 = sshll.u32 [#allocation5], 4
      %s912 = int_to_ptr.vmem [resolvable:$true] %s911
      %917 = dma.vmem_to_hbm [thread:$0]  %s912, 256, %s5, [#allocation4], 128, 128, 8
    $region29: #{tpu_custom_call.1} parent=1 // pred_fallthru
      _
    // Predicated region
    $region30: #{tpu_custom_call.1} parent=1 // pred_check
      _
    $region31: #{tpu_custom_call.1} parent=1 // pred_check_branch
      %919 = sbr.rel (0) target = $region33
    $region32: #{tpu_custom_call.1} parent=1 // pred_region
      %920 = dma.done [#allocation4], 256
    $region33: #{tpu_custom_call.1} parent=1 // pred_fallthru
      _
    %921 = vsyncpa [#allocation3], 1
    %922 = vsyncpa [#allocation4], 1

</llo_original>
